<compile_context>
chip_gen: v7x
topology: tpu7x:2x2x1
jax: 0.10.0
libtpu: 0.0.40
codegen_flags: <defaults>
</compile_context>

<pallas_src>
import math
import functools

import jax
import jax.numpy as jnp
from jax.experimental import pallas as pl
from jax.experimental.pallas import tpu as pltpu


def make_positional_encoding(sequence_max_length: int, embedding_size: int) -> jnp.ndarray:
    """Build the (sequence_max_length, embedding_size) sin/cos table (fp32)."""
    position = jnp.arange(sequence_max_length, dtype=jnp.float32)[:, None]
    div_term = jnp.exp(
        jnp.arange(0, embedding_size, 2, dtype=jnp.float32)
        * (-math.log(10000.0) / embedding_size)
    )
    pe = jnp.zeros((sequence_max_length, embedding_size), dtype=jnp.float32)
    pe = pe.at[:, 0::2].set(jnp.sin(position * div_term))
    pe = pe.at[:, 1::2].set(jnp.cos(position * div_term))
    return pe


# ----------------------------- kernels -------------------------------------


def _add_pe_kernel(x_ref, pe_ref, o_ref):
    # x_ref, pe_ref, o_ref: (tile_S, B*E) lane-dense blocks in VMEM.
    o_ref[...] = (x_ref[...] + pe_ref[...]).astype(o_ref.dtype)


def _add_pe_dropout_kernel(x_ref, pe_ref, bits_ref, o_ref, *, threshold: int, scale: float):
    # Integer-threshold dropout: drop iff bits < round(p * 2^32).
    y = x_ref[...] + pe_ref[...]
    keep = bits_ref[...] >= jnp.uint32(threshold)
    o_ref[...] = jnp.where(keep, y * scale, jnp.zeros_like(y)).astype(o_ref.dtype)


# ----------------------------- wrapper --------------------------------------


def _choose_tile_rows(S: int, row_bytes: int, target_bytes: int = 1 << 20) -> int:
    """Pick a sequence-tile size: ~target_bytes per block, multiple of 8 rows."""
    rows = max(8, (target_bytes // max(row_bytes, 1)) // 8 * 8)
    return int(min(S, rows, 1024))


def positional_encoding_forward(x, pe_table, *, p: float = 0.1,
                                training: bool = False, rng_key=None):
    """x: (seq_len, batch, embedding). Returns same shape/dtype."""
    S, B, E = x.shape
    N = B * E
    apply_dropout = bool(training) and p > 0.0

    if apply_dropout and p >= 1.0:
        return jnp.zeros_like(x)

    # Lane-dense 2D slabs: (S, B*E).  pe is pre-tiled over batch in JAX so the
    # kernel sees identically-shaped streaming blocks.
    x2 = x.reshape(S, N)
    pe2 = jnp.broadcast_to(
        pe_table[:S].astype(x.dtype)[:, None, :], (S, B, E)
    ).reshape(S, N)

    itemsize = jnp.dtype(x.dtype).itemsize
    tile_S = _choose_tile_rows(S, N * itemsize)

    # Pad the sequence axis up to a multiple of the tile (only if needed).
    if tile_S < S and S % tile_S != 0:
        S_pad = int(pl.cdiv(S, tile_S)) * tile_S
    else:
        S_pad = S
    pad = S_pad - S
    if pad:
        x2 = jnp.pad(x2, ((0, pad), (0, 0)))
        pe2 = jnp.pad(pe2, ((0, pad), (0, 0)))

    grid = (S_pad // tile_S,)
    blk = pl.BlockSpec((tile_S, N), lambda i: (i, 0))

    n_streams = 4 if apply_dropout else 3  # x, pe, (bits), out
    cost = pl.CostEstimate(
        flops=2 * S_pad * N,
        transcendentals=0,
        bytes_accessed=n_streams * S_pad * N * itemsize,
    )
    compiler_params = pltpu.CompilerParams(
        dimension_semantics=("parallel",),
        vmem_limit_bytes=32 * 1024 * 1024,
    )

    if apply_dropout:
        if rng_key is None:
            rng_key = jax.random.PRNGKey(0)
        bits = jax.random.bits(rng_key, (S_pad, N), dtype=jnp.uint32)
        threshold = min(int(round(p * 4294967296.0)), 4294967295)
        kernel = functools.partial(
            _add_pe_dropout_kernel, threshold=threshold, scale=1.0 / (1.0 - p)
        )
        out2 = pl.pallas_call(
            kernel,
            out_shape=jax.ShapeDtypeStruct((S_pad, N), x.dtype),
            grid=grid,
            in_specs=[blk, blk, blk],
            out_specs=blk,
            compiler_params=compiler_params,
            cost_estimate=cost,
        )(x2, pe2, bits)
    else:
        out2 = pl.pallas_call(
            _add_pe_kernel,
            out_shape=jax.ShapeDtypeStruct((S_pad, N), x.dtype),
            grid=grid,
            in_specs=[blk, blk],
            out_specs=blk,
            compiler_params=compiler_params,
            cost_estimate=cost,
        )(x2, pe2)

    return out2[:S].reshape(S, B, E)


# ------------------------------- test ---------------------------------------

if __name__ == "__main__":
    SEQ_MAX = 500
    EMBED = 32
    SEQ = 8
    BATCH = 2
    P = 0.1

    key = jax.random.PRNGKey(0)
    kx, kdrop = jax.random.split(key)
    x = jax.random.normal(kx, (SEQ, BATCH, EMBED), dtype=jnp.float32)

    pe_table = make_positional_encoding(SEQ_MAX, EMBED)
    ref = x + pe_table[:SEQ][:, None, :]

    # eval mode (dropout = identity): check against pure-JAX reference
    out_eval = positional_encoding_forward(x, pe_table, p=P, training=False)
    out_eval = jax.block_until_ready(out_eval)
    assert out_eval.shape == (SEQ, BATCH, EMBED)
    assert jnp.allclose(out_eval, ref, atol=1e-5, rtol=1e-5), "eval-mode mismatch"

    # training mode (dropout active; randomness from a JAX PRNG key)
    out_train = positional_encoding_forward(x, pe_table, p=P, training=True, rng_key=kdrop)
    out_train = jax.block_until_ready(out_train)
    assert out_train.shape == (SEQ, BATCH, EMBED)
    # every surviving element must be (x+pe)/(1-p); dropped elements are 0
    scaled = ref / (1.0 - P)
    ok = jnp.isclose(out_train, 0.0, atol=1e-6) | jnp.isclose(
        out_train, scaled, atol=1e-5, rtol=1e-5
    )
    assert bool(jnp.all(ok)), "train-mode dropout mismatch"

    print("KERNEL_OK")
</pallas_src>

<mosaic_0001>
module attributes {stable_mosaic.version = 11 : i64} {
  func.func @_add_pe_kernel(%arg0: i32, %arg1: memref<8x64xf32, #tpu.memory_space<vmem>>, %arg2: memref<8x64xf32, #tpu.memory_space<vmem>>, %arg3: memref<8x64xf32, #tpu.memory_space<vmem>>) attributes {dimension_semantics = [#tpu.dimension_semantics<parallel>], iteration_bounds = array<i64: 1>, scalar_prefetch = 0 : i64, scratch_operands = 0 : i64, tpu.core_type = #tpu.core_type<tc>, window_params = [{transform_indices = @transform_0, window_bounds = array<i64: 8, 64>}, {transform_indices = @transform_1, window_bounds = array<i64: 8, 64>}, {transform_indices = @transform_2, window_bounds = array<i64: 8, 64>}]} {
    %c0 = arith.constant 0 : index
    %c0_0 = arith.constant 0 : index
    %0 = vector.load %arg1[%c0, %c0_0] : memref<8x64xf32, #tpu.memory_space<vmem>>, vector<8x64xf32>
    %c0_1 = arith.constant 0 : index
    %c0_2 = arith.constant 0 : index
    %1 = vector.load %arg2[%c0_1, %c0_2] : memref<8x64xf32, #tpu.memory_space<vmem>>, vector<8x64xf32>
    %2 = arith.addf %0, %1 : vector<8x64xf32>
    %c0_3 = arith.constant 0 : index
    %c0_4 = arith.constant 0 : index
    %3 = vector.load %arg3[%c0_3, %c0_4] : memref<8x64xf32, #tpu.memory_space<vmem>>, vector<8x64xf32>
    tpu.vector_store %arg3[%c0_3, %c0_4], %2 {strides = array<i32>} : memref<8x64xf32, #tpu.memory_space<vmem>>, vector<8x64xf32>,
    return
  }
  func.func @transform_0(%arg0: i32) -> (i32, i32) {
    %c0_i32 = arith.constant 0 : i32
    %c0_i32_0 = arith.constant 0 : i32
    return %arg0, %c0_i32 : i32, i32
  }
  func.func @transform_1(%arg0: i32) -> (i32, i32) {
    %c0_i32 = arith.constant 0 : i32
    %c0_i32_0 = arith.constant 0 : i32
    return %arg0, %c0_i32 : i32, i32
  }
  func.func @transform_2(%arg0: i32) -> (i32, i32) {
    %c0_i32 = arith.constant 0 : i32
    %c0_i32_0 = arith.constant 0 : i32
    return %arg0, %c0_i32 : i32, i32
  }
}

</mosaic_0001>

<llo_original>
// kernel: tpu_custom_call.1
$region0: #{tpu_custom_call.1}
  #allocation0 [shape = 'u32[]', space=smem, size = 0x4, offset = 0x4, fixed_abs, tag = 'smem constant byte address 0x4 - core index']
  #allocation1 [shape = 'u32[144,128]{1,0:T(1,128)}', space=vmem, size = 0x12000, scoped, tag = 'internal scratch']
  %s0 = inlined_call_operand.hbm [shape: f32[8,64], index: 0, kind: input, shape index: {}]
  %s1 = inlined_call_operand.hbm [shape: f32[8,64], index: 1, kind: input, shape index: {}]
  %s2 = inlined_call_operand.hbm [shape: f32[8,64], index: 2, kind: output, shape index: {}]
  %s3 = sld [smem:[#allocation0]]
  $region26: #{tpu_custom_call.1} parent=0
    _
  %s5 = ssub.s32 1, %s3
  %s6 = scalar_select 0, %s5, %s3
  $region1: #{tpu_custom_call.1} parent=0
    #allocation2 [shape = 'u8[4096]{0}', space=vmem, size = 0x1000, scoped, tag = 'input window, operand 0, single buffered']
    #allocation3 [shape = 's32[1]{0}', space=sflag, size = 0x4, scoped, tag = 'scoped memory for tpu_custom_call.1']
    #allocation4 [shape = 's32[1]{0}', space=sflag, size = 0x4, scoped, tag = 'scoped memory for tpu_custom_call.1']
    #allocation5 [shape = 'u8[4096]{0}', space=vmem, size = 0x1000, scoped, tag = 'input window, operand 1, single buffered']
    #allocation6 [shape = 's32[1]{0}', space=sflag, size = 0x4, scoped, tag = 'scoped memory for tpu_custom_call.1']
    #allocation7 [shape = 'u8[4096]{0}', space=vmem, size = 0x1000, scoped, tag = 'output window, operand 0, single buffered']
    %7 = vsyncpa [#allocation3], 0
    %8 = vsyncpa [#allocation6], 0
    %9 = vsyncpa [#allocation4], 0
    // Predicated region
    $region2: #{tpu_custom_call.1} parent=1 // pred_check
      _
    $region3: #{tpu_custom_call.1} parent=1 // pred_check_branch
      %11 = sbr.rel (0) target = $region5
    $region4: #{tpu_custom_call.1} parent=1 // pred_region
      %s13 = ssub.s32 128, 128
      %14 = vsyncadd [#allocation3], %s13
      %s16 = sshll.u32 [#allocation2], 4
      %s17 = int_to_ptr.vmem [resolvable:$true] %s16
      %19 = dma.hbm_to_vmem [thread:$0]  %s0, 128, %s17, [#allocation3]
    $region5: #{tpu_custom_call.1} parent=1 // pred_fallthru
      _
    // Predicated region
    $region6: #{tpu_custom_call.1} parent=1 // pred_check
      _
    $region7: #{tpu_custom_call.1} parent=1 // pred_check_branch
      %21 = sbr.rel (0) target = $region9
    $region8: #{tpu_custom_call.1} parent=1 // pred_region
      %s23 = ssub.s32 128, 128
      %24 = vsyncadd [#allocation6], %s23
      %s26 = sshll.u32 [#allocation5], 4
      %s27 = int_to_ptr.vmem [resolvable:$true] %s26
      %29 = dma.hbm_to_vmem [thread:$0]  %s1, 128, %s27, [#allocation6]
    $region9: #{tpu_custom_call.1} parent=1 // pred_fallthru
      _
    // Predicated region
    $region10: #{tpu_custom_call.1} parent=1 // pred_check
      _
    $region11: #{tpu_custom_call.1} parent=1 // pred_check_branch
      %31 = sbr.rel (0) target = $region13
    $region12: #{tpu_custom_call.1} parent=1 // pred_region
      %32 = dma.done [#allocation3], 128
    $region13: #{tpu_custom_call.1} parent=1 // pred_fallthru
      _
    // Predicated region
    $region14: #{tpu_custom_call.1} parent=1 // pred_check
      _
    $region15: #{tpu_custom_call.1} parent=1 // pred_check_branch
      %34 = sbr.rel (0) target = $region17
    $region16: #{tpu_custom_call.1} parent=1 // pred_region
      %35 = dma.done [#allocation6], 128
    $region17: #{tpu_custom_call.1} parent=1 // pred_fallthru
      _
    %v36 = vld [vmem:[#allocation2] sm:$0xff]
    %v37 = vld [vmem:[#allocation5] sm:$0xff]
    %v38 = vadd.f32 %v36, %v37
    %vm39 = vcmask 523264
    %40 = vst.msk [vmem:[#allocation7] sm:$0xff] %vm39, %v38
    // Predicated region
    $region18: #{tpu_custom_call.1} parent=1 // pred_check
      _
    $region19: #{tpu_custom_call.1} parent=1 // pred_check_branch
      %42 = sbr.rel (0) target = $region21
    $region20: #{tpu_custom_call.1} parent=1 // pred_region
      %s44 = ssub.s32 128, 128
      %45 = vsyncadd [#allocation4], %s44
      %s47 = sshll.u32 [#allocation7], 4
      %s48 = int_to_ptr.vmem [resolvable:$true] %s47
      %50 = dma.vmem_to_hbm [thread:$0]  %s48, 128, %s2, [#allocation4]
    $region21: #{tpu_custom_call.1} parent=1 // pred_fallthru
      _
    // Predicated region
    $region22: #{tpu_custom_call.1} parent=1 // pred_check
      _
    $region23: #{tpu_custom_call.1} parent=1 // pred_check_branch
      %52 = sbr.rel (0) target = $region25
    $region24: #{tpu_custom_call.1} parent=1 // pred_region
      %53 = dma.done [#allocation4], 128
    $region25: #{tpu_custom_call.1} parent=1 // pred_fallthru
      _
    %54 = vsyncpa [#allocation3], 1
    %55 = vsyncpa [#allocation6], 1
    %56 = vsyncpa [#allocation4], 1

</llo_original>
